<compile_context>
chip_gen: v7x
topology: tpu7x:2x2x1
jax: 0.10.0
libtpu: 0.0.40
codegen_flags: <defaults>
</compile_context>

<pallas_src>
import jax
import jax.numpy as jnp
from jax.experimental import pallas as pl
from jax.experimental.pallas import tpu as pltpu

EPS = 1e-5  # PyTorch nn.LayerNorm default


# ---------------------------------------------------------------------------
# Kernel body
# ---------------------------------------------------------------------------
def _make_kernel(N, D, dense):
    """Build the kernel for a given layout.

    dense=True : x block is (tb, N*D), out block is (tb, N*2D)  (lane-dense HBM I/O)
    dense=False: x block is (tb*N, D), out block is (tb*N, 2D)  (leading-dim reshapes only)
    """
    D2 = 2 * D

    def kernel(x_ref, w1_ref, b1_ref, g_ref, bt_ref, w2a_ref, w2b_ref, b2_ref, o_ref):
        if dense:
            tb = x_ref.shape[0]
            x = x_ref[...].reshape(tb * N, D)      # minor-dim split (VMEM relayout at worst)
        else:
            tb = x_ref.shape[0] // N
            x = x_ref[...]                         # already (tb*N, D)

        # --- node_encoder: Linear -> LayerNorm -> ReLU  (rows = tb*N vectors) ---
        h = jnp.dot(x.astype(w1_ref.dtype), w1_ref[...],
                    preferred_element_type=jnp.float32) + b1_ref[...]
        mu = jnp.mean(h, axis=-1, keepdims=True)
        c = h - mu
        var = jnp.mean(c * c, axis=-1, keepdims=True)
        h = c * jax.lax.rsqrt(var + EPS) * g_ref[...] + bt_ref[...]
        h = jnp.maximum(h, 0.0)                                    # (tb*N, D) f32

        # --- per-polyline max over the num_vectors axis ---
        m = jnp.max(h.reshape(tb, N, D), axis=1)                   # (tb, D)

        # --- edge_encoder without concat: cat([h, m]) @ W2 == h @ W2[:D] + m @ W2[D:]
        out = jnp.dot(h.astype(w2a_ref.dtype), w2a_ref[...],
                      preferred_element_type=jnp.float32)          # (tb*N, D2)
        edge = jnp.dot(m.astype(w2b_ref.dtype), w2b_ref[...],
                       preferred_element_type=jnp.float32) + b2_ref[...]   # (tb, D2)

        res = out.reshape(tb, N, D2) + edge[:, None, :]            # (tb, N, D2)
        if dense:
            res = res.reshape(tb, N * D2)          # lane-dense (>=128 lanes) store
        else:
            res = res.reshape(tb * N, D2)
        o_ref[...] = res.astype(o_ref.dtype)

    return kernel


# ---------------------------------------------------------------------------
# Chip-aware sizing
# ---------------------------------------------------------------------------
def _tpu_limits():
    """Return (physical VMEM bytes, #TensorCores per chip) with safe fallbacks."""
    kind = ""
    try:
        kind = jax.devices()[0].device_kind.lower()
    except Exception:
        pass
    is_v7 = ("v7" in kind) or ("tpu7" in kind)
    try:
        vmem_phys = int(pltpu.get_tpu_info().vmem_capacity_bytes)
    except Exception:
        # v7x: 64 MiB per TC; v5e/v6e: 128 MiB.  Unknown -> conservative 64 MiB.
        vmem_phys = (64 if is_v7 else 128) << 20
    return vmem_phys, (2 if is_v7 else 1)


def _choose_block_batch(B, N, D, x_isz, o_isz, w_isz, vmem_limit, num_tc):
    """Polylines per grid step, sized from the VMEM budget (not a fixed row target)."""
    D2 = 2 * D
    # Double-buffered HBM-facing blocks + f32 intermediates / relayout copies.
    per_poly = N * (2 * D * x_isz + 2 * D2 * o_isz + 4 * (3 * D + 4 * D2))
    param_bytes = 2 * w_isz * (D * D + 2 * D * D2) + 4 * (3 * D + D2)
    headroom = (6 << 20) + 2 * param_bytes          # compiler / pipeline scratch
    budget = max(2 << 20, int(0.6 * max(vmem_limit - headroom, 0)))
    tb = max(1, budget // per_poly)
    tb = min(tb, max(1, 32768 // max(N, 1)))        # per-step DMA already >> step overhead
    # Keep both v7x TensorCores busy (the parallel grid axis is sharded across TCs);
    # on 1-TC chips (v5e/v6e) this clamp would only shrink the tile, so it is gated.
    if num_tc >= 2 and B > 1:
        half = pl.cdiv(B, num_tc)
        if half * N >= 128:
            tb = min(tb, half)
    return int(tb)


# ---------------------------------------------------------------------------
# Wrapper
# ---------------------------------------------------------------------------
def _forward(x, w1, b1, gamma, beta, w2, b2, *, block_batch, use_bf16, dense):
    B, N, D = x.shape
    D2 = 2 * D

    vmem_phys, num_tc = _tpu_limits()
    vmem_limit = int(min(vmem_phys * 3 // 4, 96 << 20))   # ~96 MiB on v5e/v6e, ~48 MiB on v7x

    out_dtype = jnp.bfloat16 if use_bf16 else x.dtype
    wdt = jnp.bfloat16 if use_bf16 else w1.dtype
    x_in = x.astype(jnp.bfloat16) if use_bf16 else x       # bf16 storage halves HBM reads

    x_isz = jnp.dtype(x_in.dtype).itemsize
    o_isz = jnp.dtype(out_dtype).itemsize
    w_isz = jnp.dtype(wdt).itemsize

    if block_batch is not None:
        tb = int(block_batch)
    else:
        tb = _choose_block_batch(B, N, D, x_isz, o_isz, w_isz, vmem_limit, num_tc)
    tb = max(1, min(tb, B))
    if tb < B:
        tb = max(8, (tb // 8) * 8)     # multi-block tiles: keep second-minor sublane-aligned
        if tb >= B:
            tb = B
    num_blocks = pl.cdiv(B, tb)
    Bp = num_blocks * tb

    if Bp != B:
        x_in = jnp.pad(x_in, ((0, Bp - B), (0, 0), (0, 0)))

    # Lane-dense (Bp, N*D) vs flat (Bp*N, D) presentation: both are free XLA
    # metadata reshapes of the same HBM bytes; only the in-kernel layout differs.
    if dense:
        x2 = x_in.reshape(Bp, N * D)
        x_spec = pl.BlockSpec((tb, N * D), lambda b: (b, 0))
        out_hbm = (Bp, N * D2)
        o_spec = pl.BlockSpec((tb, N * D2), lambda b: (b, 0))
    else:
        x2 = x_in.reshape(Bp * N, D)
        x_spec = pl.BlockSpec((tb * N, D), lambda b: (b, 0))
        out_hbm = (Bp * N, D2)
        o_spec = pl.BlockSpec((tb * N, D2), lambda b: (b, 0))

    # Split the edge-encoder weight so the kernel never concatenates.
    w1c = w1.astype(wdt)
    w2a = w2[:D].astype(wdt)
    w2b = w2[D:].astype(wdt)
    b1r = b1.reshape(1, D).astype(jnp.float32)
    gr = gamma.reshape(1, D).astype(jnp.float32)
    br = beta.reshape(1, D).astype(jnp.float32)
    b2r = b2.reshape(1, D2).astype(jnp.float32)

    const = lambda b: (0, 0)     # weights/biases: constant block index -> fetched once
    w_specs = [
        pl.BlockSpec((D, D), const),     # W1
        pl.BlockSpec((1, D), const),     # b1
        pl.BlockSpec((1, D), const),     # gamma
        pl.BlockSpec((1, D), const),     # beta
        pl.BlockSpec((D, D2), const),    # W2[:D]
        pl.BlockSpec((D, D2), const),    # W2[D:]
        pl.BlockSpec((1, D2), const),    # b2
    ]

    flops = 2 * Bp * N * D * D + 2 * Bp * N * D * D2 + 2 * Bp * D * D2
    bytes_accessed = (x2.size * x_isz + Bp * N * D2 * o_isz
                      + (D * D + 2 * D * D2) * w_isz + (3 * D + D2) * 4)
    cost = pl.CostEstimate(flops=int(flops), transcendentals=int(Bp * N),
                           bytes_accessed=int(bytes_accessed))

    out2 = pl.pallas_call(
        _make_kernel(N, D, dense),
        out_shape=jax.ShapeDtypeStruct(out_hbm, out_dtype),
        grid_spec=pltpu.PrefetchScalarGridSpec(
            num_scalar_prefetch=0,
            grid=(num_blocks,),
            in_specs=[x_spec] + w_specs,
            out_specs=o_spec,
        ),
        compiler_params=pltpu.CompilerParams(
            dimension_semantics=("parallel",),
            vmem_limit_bytes=vmem_limit),
        cost_estimate=cost,
    )(x2, w1c, b1r, gr, br, w2a, w2b, b2r)

    out = out2.reshape(Bp, N, D2)
    return out[:B] if Bp != B else out


def polyline_subgraph_layer(x, w1, b1, gamma, beta, w2, b2, *,
                            block_batch=None, use_bf16=False, dense_layout=None):
    """x: [B, N, D] -> [B, N, 2*D], matching PolylineSubGraphLayer.forward."""
    _, _, D = x.shape
    D2 = 2 * D

    def run(dense):
        return _forward(x, w1, b1, gamma, beta, w2, b2,
                        block_batch=block_batch, use_bf16=use_bf16, dense=dense)

    if dense_layout is not None:
        return run(bool(dense_layout))
    # Auto: use the lane-dense layout when the flat output would be lane-sparse
    # (last dim < 128 lanes).  If this toolchain cannot lower the minor-dim value
    # reshapes that layout needs, fall back to the always-lowerable flat layout.
    # (The fallback only triggers in eager execution; under jit pick explicitly.)
    if D2 % 128 != 0:
        try:
            return run(True)
        except Exception:
            return run(False)
    return run(False)


# ---------------------------------------------------------------------------
# Plain-JAX reference
# ---------------------------------------------------------------------------
def reference_jax(x, w1, b1, gamma, beta, w2, b2):
    h = x @ w1 + b1
    mu = h.mean(axis=-1, keepdims=True)
    var = ((h - mu) ** 2).mean(axis=-1, keepdims=True)
    h = (h - mu) / jnp.sqrt(var + EPS) * gamma + beta
    h = jnp.maximum(h, 0.0)
    m = h.max(axis=1, keepdims=True)
    cat = jnp.concatenate([h, jnp.broadcast_to(m, h.shape)], axis=-1)
    return cat @ w2 + b2


if __name__ == "__main__":
    def make_params(key, D):
        D2 = 2 * D
        k1, k2, k3, k4 = jax.random.split(key, 4)
        w1 = jax.random.normal(k1, (D, D), jnp.float32) / jnp.sqrt(D)
        b1 = jax.random.normal(k2, (D,), jnp.float32) * 0.01
        gamma = jnp.ones((D,), jnp.float32)
        beta = jnp.zeros((D,), jnp.float32)
        w2 = jax.random.normal(k3, (D2, D2), jnp.float32) / jnp.sqrt(D2)
        b2 = jax.random.normal(k4, (D2,), jnp.float32) * 0.01
        return w1, b1, gamma, beta, w2, b2

    key = jax.random.PRNGKey(0)
    kx1, kp1, kx2 = jax.random.split(key, 3)

    # Case 1: first VectorNet layer shape (B=2, N=8, D=32), f32, auto layout.
    B, N, D = 2, 8, 32
    x = jax.random.normal(kx1, (B, N, D), jnp.float32)
    params = make_params(kp1, D)
    ref = reference_jax(x, *params)

    out = jax.block_until_ready(polyline_subgraph_layer(x, *params))
    assert out.shape == (B, N, 2 * D), out.shape
    assert float(jnp.max(jnp.abs(out - ref))) < 1e-3, float(jnp.max(jnp.abs(out - ref)))

    # Case 2: bf16 storage / MXU path (v6e/v7x oriented), loose tolerance.
    out_bf16 = jax.block_until_ready(polyline_subgraph_layer(x, *params, use_bf16=True))
    assert out_bf16.shape == (B, N, 2 * D), out_bf16.shape
    err_bf16 = float(jnp.max(jnp.abs(out_bf16.astype(jnp.float32) - ref)))
    assert err_bf16 < 0.35, err_bf16

    # Case 3: multi-block grid + batch padding through the explicit flat layout
    # (the always-lowerable fallback path).
    B2 = 20
    x2 = jax.random.normal(kx2, (B2, N, D), jnp.float32)
    ref2 = reference_jax(x2, *params)
    out2 = jax.block_until_ready(
        polyline_subgraph_layer(x2, *params, block_batch=8, dense_layout=False))
    assert out2.shape == (B2, N, 2 * D), out2.shape
    assert float(jnp.max(jnp.abs(out2 - ref2))) < 1e-3, float(jnp.max(jnp.abs(out2 - ref2)))

    # Case 4: same data, multi-block, auto (lane-dense) layout.
    out3 = jax.block_until_ready(polyline_subgraph_layer(x2, *params, block_batch=8))
    assert float(jnp.max(jnp.abs(out3 - ref2))) < 1e-3, float(jnp.max(jnp.abs(out3 - ref2)))

    print("KERNEL_OK")
</pallas_src>

<mosaic_0001>
module attributes {stable_mosaic.version = 11 : i64} {
  func.func @kernel(%arg0: i32, %arg1: memref<2x256xf32, #tpu.memory_space<vmem>>, %arg2: memref<32x32xf32, #tpu.memory_space<vmem>>, %arg3: memref<1x32xf32, #tpu.memory_space<vmem>>, %arg4: memref<1x32xf32, #tpu.memory_space<vmem>>, %arg5: memref<1x32xf32, #tpu.memory_space<vmem>>, %arg6: memref<32x64xf32, #tpu.memory_space<vmem>>, %arg7: memref<32x64xf32, #tpu.memory_space<vmem>>, %arg8: memref<1x64xf32, #tpu.memory_space<vmem>>, %arg9: memref<2x512xf32, #tpu.memory_space<vmem>>) attributes {dimension_semantics = [#tpu.dimension_semantics<parallel>], iteration_bounds = array<i64: 1>, scalar_prefetch = 0 : i64, scratch_operands = 0 : i64, tpu.core_type = #tpu.core_type<tc>, window_params = [{transform_indices = @transform_0, window_bounds = array<i64: 2, 256>}, {pipeline_mode = #tpu.pipeline_mode<synchronous>, transform_indices = @transform_1, window_bounds = array<i64: 32, 32>}, {pipeline_mode = #tpu.pipeline_mode<synchronous>, transform_indices = @transform_2, window_bounds = array<i64: 1, 32>}, {pipeline_mode = #tpu.pipeline_mode<synchronous>, transform_indices = @transform_3, window_bounds = array<i64: 1, 32>}, {pipeline_mode = #tpu.pipeline_mode<synchronous>, transform_indices = @transform_4, window_bounds = array<i64: 1, 32>}, {pipeline_mode = #tpu.pipeline_mode<synchronous>, transform_indices = @transform_5, window_bounds = array<i64: 32, 64>}, {pipeline_mode = #tpu.pipeline_mode<synchronous>, transform_indices = @transform_6, window_bounds = array<i64: 32, 64>}, {pipeline_mode = #tpu.pipeline_mode<synchronous>, transform_indices = @transform_7, window_bounds = array<i64: 1, 64>}, {transform_indices = @transform_8, window_bounds = array<i64: 2, 512>}]} {
    %c0 = arith.constant 0 : index
    %c0_0 = arith.constant 0 : index
    %0 = vector.load %arg1[%c0, %c0_0] : memref<2x256xf32, #tpu.memory_space<vmem>>, vector<2x256xf32>
    %1 = vector.shape_cast %0 : vector<2x256xf32> to vector<16x32xf32>
    %c0_1 = arith.constant 0 : index
    %c0_2 = arith.constant 0 : index
    %2 = vector.load %arg2[%c0_1, %c0_2] : memref<32x32xf32, #tpu.memory_space<vmem>>, vector<32x32xf32>
    %cst = arith.constant dense<0.000000e+00> : vector<16x32xf32>
    %3 = tpu.matmul %1, %2, %cst {dimension_numbers = #tpu.dot_dimension_numbers<[1], [0], [0], [1], [0, 0, 1, 1], [], []>} : vector<16x32xf32>, vector<32x32xf32>, vector<16x32xf32> -> vector<16x32xf32>
    %c0_3 = arith.constant 0 : index
    %c0_4 = arith.constant 0 : index
    %4 = vector.load %arg3[%c0_3, %c0_4] : memref<1x32xf32, #tpu.memory_space<vmem>>, vector<1x32xf32>
    %5 = vector.broadcast %4 : vector<1x32xf32> to vector<16x32xf32>
    %6 = arith.addf %3, %5 : vector<16x32xf32>
    %cst_5 = arith.constant dense<0.000000e+00> : vector<16xf32>
    %7 = vector.multi_reduction <add>, %6, %cst_5 [1] : vector<16x32xf32> to vector<16xf32>
    %8 = vector.shape_cast %7 : vector<16xf32> to vector<16x1xf32>
    %cst_6 = arith.constant 3.200000e+01 : f32
    %9 = vector.broadcast %cst_6 : f32 to vector<16x1xf32>
    %10 = arith.divf %8, %9 : vector<16x1xf32>
    %11 = vector.broadcast %10 : vector<16x1xf32> to vector<16x32xf32>
    %12 = arith.subf %6, %11 : vector<16x32xf32>
    %13 = arith.mulf %12, %12 : vector<16x32xf32>
    %cst_7 = arith.constant dense<0.000000e+00> : vector<16xf32>
    %14 = vector.multi_reduction <add>, %13, %cst_7 [1] : vector<16x32xf32> to vector<16xf32>
    %15 = vector.shape_cast %14 : vector<16xf32> to vector<16x1xf32>
    %cst_8 = arith.constant 3.200000e+01 : f32
    %16 = vector.broadcast %cst_8 : f32 to vector<16x1xf32>
    %17 = arith.divf %15, %16 : vector<16x1xf32>
    %cst_9 = arith.constant 9.99999974E-6 : f32
    %18 = vector.broadcast %cst_9 : f32 to vector<16x1xf32>
    %19 = arith.addf %17, %18 : vector<16x1xf32>
    %20 = math.rsqrt %19 : vector<16x1xf32>
    %21 = vector.broadcast %20 : vector<16x1xf32> to vector<16x32xf32>
    %22 = arith.mulf %12, %21 : vector<16x32xf32>
    %c0_10 = arith.constant 0 : index
    %c0_11 = arith.constant 0 : index
    %23 = vector.load %arg4[%c0_10, %c0_11] : memref<1x32xf32, #tpu.memory_space<vmem>>, vector<1x32xf32>
    %24 = vector.broadcast %23 : vector<1x32xf32> to vector<16x32xf32>
    %25 = arith.mulf %22, %24 : vector<16x32xf32>
    %c0_12 = arith.constant 0 : index
    %c0_13 = arith.constant 0 : index
    %26 = vector.load %arg5[%c0_12, %c0_13] : memref<1x32xf32, #tpu.memory_space<vmem>>, vector<1x32xf32>
    %27 = vector.broadcast %26 : vector<1x32xf32> to vector<16x32xf32>
    %28 = arith.addf %25, %27 : vector<16x32xf32>
    %cst_14 = arith.constant 0.000000e+00 : f32
    %29 = vector.broadcast %cst_14 : f32 to vector<16x32xf32>
    %30 = arith.maximumf %28, %29 : vector<16x32xf32>
    %31 = vector.shape_cast %30 : vector<16x32xf32> to vector<2x8x32xf32>
    %cst_15 = arith.constant dense<0xFF800000> : vector<2x32xf32>
    %32 = vector.multi_reduction <maximumf>, %31, %cst_15 [1] : vector<2x8x32xf32> to vector<2x32xf32>
    %c0_16 = arith.constant 0 : index
    %c0_17 = arith.constant 0 : index
    %33 = vector.load %arg6[%c0_16, %c0_17] : memref<32x64xf32, #tpu.memory_space<vmem>>, vector<32x64xf32>
    %cst_18 = arith.constant dense<0.000000e+00> : vector<16x64xf32>
    %34 = tpu.matmul %30, %33, %cst_18 {dimension_numbers = #tpu.dot_dimension_numbers<[1], [0], [0], [1], [0, 0, 1, 1], [], []>} : vector<16x32xf32>, vector<32x64xf32>, vector<16x64xf32> -> vector<16x64xf32>
    %c0_19 = arith.constant 0 : index
    %c0_20 = arith.constant 0 : index
    %35 = vector.load %arg7[%c0_19, %c0_20] : memref<32x64xf32, #tpu.memory_space<vmem>>, vector<32x64xf32>
    %cst_21 = arith.constant dense<0.000000e+00> : vector<2x64xf32>
    %36 = tpu.matmul %32, %35, %cst_21 {dimension_numbers = #tpu.dot_dimension_numbers<[1], [0], [0], [1], [0, 0, 1, 1], [], []>} : vector<2x32xf32>, vector<32x64xf32>, vector<2x64xf32> -> vector<2x64xf32>
    %c0_22 = arith.constant 0 : index
    %c0_23 = arith.constant 0 : index
    %37 = vector.load %arg8[%c0_22, %c0_23] : memref<1x64xf32, #tpu.memory_space<vmem>>, vector<1x64xf32>
    %38 = vector.broadcast %37 : vector<1x64xf32> to vector<2x64xf32>
    %39 = arith.addf %36, %38 : vector<2x64xf32>
    %40 = vector.shape_cast %34 : vector<16x64xf32> to vector<2x8x64xf32>
    %41 = vector.shape_cast %39 : vector<2x64xf32> to vector<2x1x64xf32>
    %42 = vector.broadcast %41 : vector<2x1x64xf32> to vector<2x8x64xf32>
    %43 = arith.addf %40, %42 : vector<2x8x64xf32>
    %44 = vector.shape_cast %43 : vector<2x8x64xf32> to vector<2x512xf32>
    %c0_24 = arith.constant 0 : index
    %c0_25 = arith.constant 0 : index
    %45 = vector.load %arg9[%c0_24, %c0_25] : memref<2x512xf32, #tpu.memory_space<vmem>>, vector<2x512xf32>
    tpu.vector_store %arg9[%c0_24, %c0_25], %44 {strides = array<i32>} : memref<2x512xf32, #tpu.memory_space<vmem>>, vector<2x512xf32>,
    return
  }
  func.func @transform_0(%arg0: i32) -> (i32, i32) {
    %c0_i32 = arith.constant 0 : i32
    %c0_i32_0 = arith.constant 0 : i32
    return %arg0, %c0_i32 : i32, i32
  }
  func.func @transform_1(%arg0: i32) -> (i32, i32) {
    %c0_i32 = arith.constant 0 : i32
    %c0_i32_0 = arith.constant 0 : i32
    %c0_i32_1 = arith.constant 0 : i32
    return %c0_i32, %c0_i32_0 : i32, i32
  }
  func.func @transform_2(%arg0: i32) -> (i32, i32) {
    %c0_i32 = arith.constant 0 : i32
    %c0_i32_0 = arith.constant 0 : i32
    %c0_i32_1 = arith.constant 0 : i32
    return %c0_i32, %c0_i32_0 : i32, i32
  }
  func.func @transform_3(%arg0: i32) -> (i32, i32) {
    %c0_i32 = arith.constant 0 : i32
    %c0_i32_0 = arith.constant 0 : i32
    %c0_i32_1 = arith.constant 0 : i32
    return %c0_i32, %c0_i32_0 : i32, i32
  }
  func.func @transform_4(%arg0: i32) -> (i32, i32) {
    %c0_i32 = arith.constant 0 : i32
    %c0_i32_0 = arith.constant 0 : i32
    %c0_i32_1 = arith.constant 0 : i32
    return %c0_i32, %c0_i32_0 : i32, i32
  }
  func.func @transform_5(%arg0: i32) -> (i32, i32) {
    %c0_i32 = arith.constant 0 : i32
    %c0_i32_0 = arith.constant 0 : i32
    %c0_i32_1 = arith.constant 0 : i32
    return %c0_i32, %c0_i32_0 : i32, i32
  }
  func.func @transform_6(%arg0: i32) -> (i32, i32) {
    %c0_i32 = arith.constant 0 : i32
    %c0_i32_0 = arith.constant 0 : i32
    %c0_i32_1 = arith.constant 0 : i32
    return %c0_i32, %c0_i32_0 : i32, i32
  }
  func.func @transform_7(%arg0: i32) -> (i32, i32) {
    %c0_i32 = arith.constant 0 : i32
    %c0_i32_0 = arith.constant 0 : i32
    %c0_i32_1 = arith.constant 0 : i32
    return %c0_i32, %c0_i32_0 : i32, i32
  }
  func.func @transform_8(%arg0: i32) -> (i32, i32) {
    %c0_i32 = arith.constant 0 : i32
    %c0_i32_0 = arith.constant 0 : i32
    return %arg0, %c0_i32 : i32, i32
  }
}

module attributes {stable_mosaic.version = 11 : i64} {
  func.func @kernel(%arg0: i32, %arg1: memref<16x32xf32, #tpu.memory_space<vmem>>, %arg2: memref<32x32xf32, #tpu.memory_space<vmem>>, %arg3: memref<1x32xf32, #tpu.memory_space<vmem>>, %arg4: memref<1x32xf32, #tpu.memory_space<vmem>>, %arg5: memref<1x32xf32, #tpu.memory_space<vmem>>, %arg6: memref<32x64xf32, #tpu.memory_space<vmem>>, %arg7: memref<32x64xf32, #tpu.memory_space<vmem>>, %arg8: memref<1x64xf32, #tpu.memory_space<vmem>>, %arg9: memref<16x64xf32, #tpu.memory_space<vmem>>) attributes {dimension_semantics = [#tpu.dimension_semantics<parallel>], iteration_bounds = array<i64: 1>, scalar_prefetch = 0 : i64, scratch_operands = 0 : i64, tpu.core_type = #tpu.core_type<tc>, window_params = [{transform_indices = @transform_0, window_bounds = array<i64: 16, 32>}, {pipeline_mode = #tpu.pipeline_mode<synchronous>, transform_indices = @transform_1, window_bounds = array<i64: 32, 32>}, {pipeline_mode = #tpu.pipeline_mode<synchronous>, transform_indices = @transform_2, window_bounds = array<i64: 1, 32>}, {pipeline_mode = #tpu.pipeline_mode<synchronous>, transform_indices = @transform_3, window_bounds = array<i64: 1, 32>}, {pipeline_mode = #tpu.pipeline_mode<synchronous>, transform_indices = @transform_4, window_bounds = array<i64: 1, 32>}, {pipeline_mode = #tpu.pipeline_mode<synchronous>, transform_indices = @transform_5, window_bounds = array<i64: 32, 64>}, {pipeline_mode = #tpu.pipeline_mode<synchronous>, transform_indices = @transform_6, window_bounds = array<i64: 32, 64>}, {pipeline_mode = #tpu.pipeline_mode<synchronous>, transform_indices = @transform_7, window_bounds = array<i64: 1, 64>}, {transform_indices = @transform_8, window_bounds = array<i64: 16, 64>}]} {
    %c0 = arith.constant 0 : index
    %c0_0 = arith.constant 0 : index
    %0 = vector.load %arg1[%c0, %c0_0] : memref<16x32xf32, #tpu.memory_space<vmem>>, vector<16x32xf32>
    %c0_1 = arith.constant 0 : index
    %c0_2 = arith.constant 0 : index
    %1 = vector.load %arg2[%c0_1, %c0_2] : memref<32x32xf32, #tpu.memory_space<vmem>>, vector<32x32xf32>
    %cst = arith.constant dense<0.000000e+00> : vector<16x32xf32>
    %2 = tpu.matmul %0, %1, %cst {dimension_numbers = #tpu.dot_dimension_numbers<[1], [0], [0], [1], [0, 0, 1, 1], [], []>} : vector<16x32xf32>, vector<32x32xf32>, vector<16x32xf32> -> vector<16x32xf32>
    %c0_3 = arith.constant 0 : index
    %c0_4 = arith.constant 0 : index
    %3 = vector.load %arg3[%c0_3, %c0_4] : memref<1x32xf32, #tpu.memory_space<vmem>>, vector<1x32xf32>
    %4 = vector.broadcast %3 : vector<1x32xf32> to vector<16x32xf32>
    %5 = arith.addf %2, %4 : vector<16x32xf32>
    %cst_5 = arith.constant dense<0.000000e+00> : vector<16xf32>
    %6 = vector.multi_reduction <add>, %5, %cst_5 [1] : vector<16x32xf32> to vector<16xf32>
    %7 = vector.shape_cast %6 : vector<16xf32> to vector<16x1xf32>
    %cst_6 = arith.constant 3.200000e+01 : f32
    %8 = vector.broadcast %cst_6 : f32 to vector<16x1xf32>
    %9 = arith.divf %7, %8 : vector<16x1xf32>
    %10 = vector.broadcast %9 : vector<16x1xf32> to vector<16x32xf32>
    %11 = arith.subf %5, %10 : vector<16x32xf32>
    %12 = arith.mulf %11, %11 : vector<16x32xf32>
    %cst_7 = arith.constant dense<0.000000e+00> : vector<16xf32>
    %13 = vector.multi_reduction <add>, %12, %cst_7 [1] : vector<16x32xf32> to vector<16xf32>
    %14 = vector.shape_cast %13 : vector<16xf32> to vector<16x1xf32>
    %cst_8 = arith.constant 3.200000e+01 : f32
    %15 = vector.broadcast %cst_8 : f32 to vector<16x1xf32>
    %16 = arith.divf %14, %15 : vector<16x1xf32>
    %cst_9 = arith.constant 9.99999974E-6 : f32
    %17 = vector.broadcast %cst_9 : f32 to vector<16x1xf32>
    %18 = arith.addf %16, %17 : vector<16x1xf32>
    %19 = math.rsqrt %18 : vector<16x1xf32>
    %20 = vector.broadcast %19 : vector<16x1xf32> to vector<16x32xf32>
    %21 = arith.mulf %11, %20 : vector<16x32xf32>
    %c0_10 = arith.constant 0 : index
    %c0_11 = arith.constant 0 : index
    %22 = vector.load %arg4[%c0_10, %c0_11] : memref<1x32xf32, #tpu.memory_space<vmem>>, vector<1x32xf32>
    %23 = vector.broadcast %22 : vector<1x32xf32> to vector<16x32xf32>
    %24 = arith.mulf %21, %23 : vector<16x32xf32>
    %c0_12 = arith.constant 0 : index
    %c0_13 = arith.constant 0 : index
    %25 = vector.load %arg5[%c0_12, %c0_13] : memref<1x32xf32, #tpu.memory_space<vmem>>, vector<1x32xf32>
    %26 = vector.broadcast %25 : vector<1x32xf32> to vector<16x32xf32>
    %27 = arith.addf %24, %26 : vector<16x32xf32>
    %cst_14 = arith.constant 0.000000e+00 : f32
    %28 = vector.broadcast %cst_14 : f32 to vector<16x32xf32>
    %29 = arith.maximumf %27, %28 : vector<16x32xf32>
    %30 = vector.shape_cast %29 : vector<16x32xf32> to vector<2x8x32xf32>
    %cst_15 = arith.constant dense<0xFF800000> : vector<2x32xf32>
    %31 = vector.multi_reduction <maximumf>, %30, %cst_15 [1] : vector<2x8x32xf32> to vector<2x32xf32>
    %c0_16 = arith.constant 0 : index
    %c0_17 = arith.constant 0 : index
    %32 = vector.load %arg6[%c0_16, %c0_17] : memref<32x64xf32, #tpu.memory_space<vmem>>, vector<32x64xf32>
    %cst_18 = arith.constant dense<0.000000e+00> : vector<16x64xf32>
    %33 = tpu.matmul %29, %32, %cst_18 {dimension_numbers = #tpu.dot_dimension_numbers<[1], [0], [0], [1], [0, 0, 1, 1], [], []>} : vector<16x32xf32>, vector<32x64xf32>, vector<16x64xf32> -> vector<16x64xf32>
    %c0_19 = arith.constant 0 : index
    %c0_20 = arith.constant 0 : index
    %34 = vector.load %arg7[%c0_19, %c0_20] : memref<32x64xf32, #tpu.memory_space<vmem>>, vector<32x64xf32>
    %cst_21 = arith.constant dense<0.000000e+00> : vector<2x64xf32>
    %35 = tpu.matmul %31, %34, %cst_21 {dimension_numbers = #tpu.dot_dimension_numbers<[1], [0], [0], [1], [0, 0, 1, 1], [], []>} : vector<2x32xf32>, vector<32x64xf32>, vector<2x64xf32> -> vector<2x64xf32>
    %c0_22 = arith.constant 0 : index
    %c0_23 = arith.constant 0 : index
    %36 = vector.load %arg8[%c0_22, %c0_23] : memref<1x64xf32, #tpu.memory_space<vmem>>, vector<1x64xf32>
    %37 = vector.broadcast %36 : vector<1x64xf32> to vector<2x64xf32>
    %38 = arith.addf %35, %37 : vector<2x64xf32>
    %39 = vector.shape_cast %33 : vector<16x64xf32> to vector<2x8x64xf32>
    %40 = vector.shape_cast %38 : vector<2x64xf32> to vector<2x1x64xf32>
    %41 = vector.broadcast %40 : vector<2x1x64xf32> to vector<2x8x64xf32>
    %42 = arith.addf %39, %41 : vector<2x8x64xf32>
    %43 = vector.shape_cast %42 : vector<2x8x64xf32> to vector<16x64xf32>
    %c0_24 = arith.constant 0 : index
    %c0_25 = arith.constant 0 : index
    %44 = vector.load %arg9[%c0_24, %c0_25] : memref<16x64xf32, #tpu.memory_space<vmem>>, vector<16x64xf32>
    tpu.vector_store %arg9[%c0_24, %c0_25], %43 {strides = array<i32>} : memref<16x64xf32, #tpu.memory_space<vmem>>, vector<16x64xf32>,
    return
  }
  func.func @transform_0(%arg0: i32) -> (i32, i32) {
    %c0_i32 = arith.constant 0 : i32
    %c0_i32_0 = arith.constant 0 : i32
    return %arg0, %c0_i32 : i32, i32
  }
  func.func @transform_1(%arg0: i32) -> (i32, i32) {
    %c0_i32 = arith.constant 0 : i32
    %c0_i32_0 = arith.constant 0 : i32
    %c0_i32_1 = arith.constant 0 : i32
    return %c0_i32, %c0_i32_0 : i32, i32
  }
  func.func @transform_2(%arg0: i32) -> (i32, i32) {
    %c0_i32 = arith.constant 0 : i32
    %c0_i32_0 = arith.constant 0 : i32
    %c0_i32_1 = arith.constant 0 : i32
    return %c0_i32, %c0_i32_0 : i32, i32
  }
  func.func @transform_3(%arg0: i32) -> (i32, i32) {
    %c0_i32 = arith.constant 0 : i32
    %c0_i32_0 = arith.constant 0 : i32
    %c0_i32_1 = arith.constant 0 : i32
    return %c0_i32, %c0_i32_0 : i32, i32
  }
  func.func @transform_4(%arg0: i32) -> (i32, i32) {
    %c0_i32 = arith.constant 0 : i32
    %c0_i32_0 = arith.constant 0 : i32
    %c0_i32_1 = arith.constant 0 : i32
    return %c0_i32, %c0_i32_0 : i32, i32
  }
  func.func @transform_5(%arg0: i32) -> (i32, i32) {
    %c0_i32 = arith.constant 0 : i32
    %c0_i32_0 = arith.constant 0 : i32
    %c0_i32_1 = arith.constant 0 : i32
    return %c0_i32, %c0_i32_0 : i32, i32
  }
  func.func @transform_6(%arg0: i32) -> (i32, i32) {
    %c0_i32 = arith.constant 0 : i32
    %c0_i32_0 = arith.constant 0 : i32
    %c0_i32_1 = arith.constant 0 : i32
    return %c0_i32, %c0_i32_0 : i32, i32
  }
  func.func @transform_7(%arg0: i32) -> (i32, i32) {
    %c0_i32 = arith.constant 0 : i32
    %c0_i32_0 = arith.constant 0 : i32
    %c0_i32_1 = arith.constant 0 : i32
    return %c0_i32, %c0_i32_0 : i32, i32
  }
  func.func @transform_8(%arg0: i32) -> (i32, i32) {
    %c0_i32 = arith.constant 0 : i32
    %c0_i32_0 = arith.constant 0 : i32
    return %arg0, %c0_i32 : i32, i32
  }
}

</mosaic_0001>

<llo_original>
// kernel: tpu_custom_call.1
$region0: #{tpu_custom_call.1}
  #allocation0 [shape = 'u32[]', space=smem, size = 0x4, offset = 0x4, fixed_abs, tag = 'smem constant byte address 0x4 - core index']
  #allocation1 [shape = 'u32[144,128]{1,0:T(1,128)}', space=vmem, size = 0x12000, scoped, tag = 'internal scratch']
  %s0 = inlined_call_operand.hbm [shape: f32[16,32], index: 0, kind: input, shape index: {}]
  %s1 = inlined_call_operand.hbm [shape: f32[32,32], index: 1, kind: input, shape index: {}]
  %s2 = inlined_call_operand.hbm [shape: f32[1,32], index: 2, kind: input, shape index: {}]
  %s3 = inlined_call_operand.hbm [shape: f32[1,32], index: 3, kind: input, shape index: {}]
  %s4 = inlined_call_operand.hbm [shape: f32[1,32], index: 4, kind: input, shape index: {}]
  %s5 = inlined_call_operand.hbm [shape: f32[32,64], index: 5, kind: input, shape index: {}]
  %s6 = inlined_call_operand.hbm [shape: f32[32,64], index: 6, kind: input, shape index: {}]
  %s7 = inlined_call_operand.hbm [shape: f32[1,64], index: 7, kind: input, shape index: {}]
  %s8 = inlined_call_operand.hbm [shape: f32[16,64], index: 8, kind: output, shape index: {}]
  %s9 = sld [smem:[#allocation0]]
  $region74: #{tpu_custom_call.1} parent=0
    _
  %s11 = ssub.s32 1, %s9
  %s12 = scalar_select 0, %s11, %s9
  $region1: #{tpu_custom_call.1} parent=0
    #allocation2 [shape = 'u8[8192]{0}', space=vmem, size = 0x2000, scoped, tag = 'input window, operand 0, single buffered']
    #allocation3 [shape = 's32[1]{0}', space=sflag, size = 0x4, scoped, tag = 'scoped memory for tpu_custom_call.1']
    #allocation4 [shape = 's32[1]{0}', space=sflag, size = 0x4, scoped, tag = 'scoped memory for tpu_custom_call.1']
    #allocation5 [shape = 'u8[16384]{0}', space=vmem, size = 0x4000, scoped, tag = 'input window, operand 1, single buffered']
    #allocation6 [shape = 's32[1]{0}', space=sflag, size = 0x4, scoped, tag = 'scoped memory for tpu_custom_call.1']
    #allocation7 [shape = 'u8[512]{0}', space=vmem, size = 0x400, scoped, tag = 'input window, operand 2, single buffered']
    #allocation8 [shape = 'u8[512]{0}', space=vmem, size = 0x400, scoped, tag = 'input window, operand 3, single buffered']
    #allocation9 [shape = 's32[1]{0}', space=sflag, size = 0x4, scoped, tag = 'scoped memory for tpu_custom_call.1']
    #allocation10 [shape = 'u8[512]{0}', space=vmem, size = 0x400, scoped, tag = 'input window, operand 4, single buffered']
    #allocation11 [shape = 'u8[16384]{0}', space=vmem, size = 0x4000, scoped, tag = 'input window, operand 5, single buffered']
    #allocation12 [shape = 's32[1]{0}', space=sflag, size = 0x4, scoped, tag = 'scoped memory for tpu_custom_call.1']
    #allocation13 [shape = 'u8[16384]{0}', space=vmem, size = 0x4000, scoped, tag = 'input window, operand 6, single buffered']
    #allocation14 [shape = 'u8[512]{0}', space=vmem, size = 0x400, scoped, tag = 'input window, operand 7, single buffered']
    #allocation15 [shape = 's32[1]{0}', space=sflag, size = 0x4, scoped, tag = 'scoped memory for tpu_custom_call.1']
    #allocation16 [shape = 'u8[8192]{0}', space=vmem, size = 0x2000, scoped, tag = 'output window, operand 0, single buffered']
    %13 = vsyncpa [#allocation3], 0
    %14 = vsyncpa [#allocation6], 0
    %15 = vsyncpa [#allocation9], 0
    %16 = vsyncpa [#allocation12], 0
    %17 = vsyncpa [#allocation15], 0
    %18 = vsyncpa [#allocation4], 0
    // Predicated region
    $region2: #{tpu_custom_call.1} parent=1 // pred_check
      _
    $region3: #{tpu_custom_call.1} parent=1 // pred_check_branch
      %20 = sbr.rel (0) target = $region5
    $region4: #{tpu_custom_call.1} parent=1 // pred_region
      %s22 = ssub.s32 256, 256
      %23 = vsyncadd [#allocation3], %s22
      %s24 = sshll.u32 [#allocation2], 4
      %s25 = int_to_ptr.vmem [resolvable:$true] %s24
      %30 = dma.hbm_to_vmem [thread:$0]  %s0, 256, %s25, [#allocation3], 128, 128, 8
    $region5: #{tpu_custom_call.1} parent=1 // pred_fallthru
      _
    // Predicated region
    $region6: #{tpu_custom_call.1} parent=1 // pred_check
      _
    $region7: #{tpu_custom_call.1} parent=1 // pred_check_branch
      %32 = sbr.rel (0) target = $region9
    $region8: #{tpu_custom_call.1} parent=1 // pred_region
      %s34 = ssub.s32 512, 512
      %35 = vsyncadd [#allocation6], %s34
      %s36 = sshll.u32 [#allocation5], 4
      %s37 = int_to_ptr.vmem [resolvable:$true] %s36
      %42 = dma.hbm_to_vmem [thread:$0]  %s1, 512, %s37, [#allocation6], 128, 128, 8
    $region9: #{tpu_custom_call.1} parent=1 // pred_fallthru
      _
    // Predicated region
    $region10: #{tpu_custom_call.1} parent=1 // pred_check
      _
    $region11: #{tpu_custom_call.1} parent=1 // pred_check_branch
      %44 = sbr.rel (0) target = $region13
    $region12: #{tpu_custom_call.1} parent=1 // pred_region
      %s46 = ssub.s32 16, 16
      %47 = vsyncadd [#allocation6], %s46
      %s49 = sshll.u32 [#allocation7], 4
      %s50 = int_to_ptr.vmem [resolvable:$true] %s49
      %52 = dma.hbm_to_vmem [thread:$0]  %s2, 16, %s50, [#allocation6]
    $region13: #{tpu_custom_call.1} parent=1 // pred_fallthru
      _
    // Predicated region
    $region14: #{tpu_custom_call.1} parent=1 // pred_check
      _
    $region15: #{tpu_custom_call.1} parent=1 // pred_check_branch
      %54 = sbr.rel (0) target = $region17
    $region16: #{tpu_custom_call.1} parent=1 // pred_region
      %s56 = ssub.s32 16, 16
      %57 = vsyncadd [#allocation9], %s56
      %s59 = sshll.u32 [#allocation8], 4
      %s60 = int_to_ptr.vmem [resolvable:$true] %s59
      %62 = dma.hbm_to_vmem [thread:$0]  %s3, 16, %s60, [#allocation9]
    $region17: #{tpu_custom_call.1} parent=1 // pred_fallthru
      _
    // Predicated region
    $region18: #{tpu_custom_call.1} parent=1 // pred_check
      _
    $region19: #{tpu_custom_call.1} parent=1 // pred_check_branch
      %64 = sbr.rel (0) target = $region21
    $region20: #{tpu_custom_call.1} parent=1 // pred_region
      %s66 = ssub.s32 16, 16
      %67 = vsyncadd [#allocation9], %s66
      %s69 = sshll.u32 [#allocation10], 4
      %s70 = int_to_ptr.vmem [resolvable:$true] %s69
      %72 = dma.hbm_to_vmem [thread:$0]  %s4, 16, %s70, [#allocation9]
    $region21: #{tpu_custom_call.1} parent=1 // pred_fallthru
      _
    // Predicated region
    $region22: #{tpu_custom_call.1} parent=1 // pred_check
      _
    $region23: #{tpu_custom_call.1} parent=1 // pred_check_branch
      %74 = sbr.rel (0) target = $region25
    $region24: #{tpu_custom_call.1} parent=1 // pred_region
      %s76 = ssub.s32 512, 512
      %77 = vsyncadd [#allocation12], %s76
      %s78 = sshll.u32 [#allocation11], 4
      %s79 = int_to_ptr.vmem [resolvable:$true] %s78
      %84 = dma.hbm_to_vmem [thread:$0]  %s5, 512, %s79, [#allocation12], 128, 128, 8
    $region25: #{tpu_custom_call.1} parent=1 // pred_fallthru
      _
    // Predicated region
    $region26: #{tpu_custom_call.1} parent=1 // pred_check
      _
    $region27: #{tpu_custom_call.1} parent=1 // pred_check_branch
      %86 = sbr.rel (0) target = $region29
    $region28: #{tpu_custom_call.1} parent=1 // pred_region
      %s88 = ssub.s32 512, 512
      %89 = vsyncadd [#allocation12], %s88
      %s90 = sshll.u32 [#allocation13], 4
      %s91 = int_to_ptr.vmem [resolvable:$true] %s90
      %96 = dma.hbm_to_vmem [thread:$0]  %s6, 512, %s91, [#allocation12], 128, 128, 8
    $region29: #{tpu_custom_call.1} parent=1 // pred_fallthru
      _
    // Predicated region
    $region30: #{tpu_custom_call.1} parent=1 // pred_check
      _
    $region31: #{tpu_custom_call.1} parent=1 // pred_check_branch
      %98 = sbr.rel (0) target = $region33
    $region32: #{tpu_custom_call.1} parent=1 // pred_region
      %s100 = ssub.s32 16, 16
      %101 = vsyncadd [#allocation15], %s100
      %s103 = sshll.u32 [#allocation14], 4
      %s104 = int_to_ptr.vmem [resolvable:$true] %s103
      %106 = dma.hbm_to_vmem [thread:$0]  %s7, 16, %s104, [#allocation15]
    $region33: #{tpu_custom_call.1} parent=1 // pred_fallthru
      _
    // Predicated region
    $region34: #{tpu_custom_call.1} parent=1 // pred_check
      _
    $region35: #{tpu_custom_call.1} parent=1 // pred_check_branch
      %108 = sbr.rel (0) target = $region37
    $region36: #{tpu_custom_call.1} parent=1 // pred_region
      %109 = dma.done [#allocation3], 256
    $region37: #{tpu_custom_call.1} parent=1 // pred_fallthru
      _
    // Predicated region
    $region38: #{tpu_custom_call.1} parent=1 // pred_check
      _
    $region39: #{tpu_custom_call.1} parent=1 // pred_check_branch
      %111 = sbr.rel (0) target = $region41
    $region40: #{tpu_custom_call.1} parent=1 // pred_region
      %112 = dma.done [#allocation6], 512
    $region41: #{tpu_custom_call.1} parent=1 // pred_fallthru
      _
    // Predicated region
    $region42: #{tpu_custom_call.1} parent=1 // pred_check
      _
    $region43: #{tpu_custom_call.1} parent=1 // pred_check_branch
      %114 = sbr.rel (0) target = $region45
    $region44: #{tpu_custom_call.1} parent=1 // pred_region
      %115 = dma.done [#allocation6], 16
    $region45: #{tpu_custom_call.1} parent=1 // pred_fallthru
      _
    // Predicated region
    $region46: #{tpu_custom_call.1} parent=1 // pred_check
      _
    $region47: #{tpu_custom_call.1} parent=1 // pred_check_branch
      %117 = sbr.rel (0) target = $region49
    $region48: #{tpu_custom_call.1} parent=1 // pred_region
      %118 = dma.done [#allocation9], 16
    $region49: #{tpu_custom_call.1} parent=1 // pred_fallthru
      _
    // Predicated region
    $region50: #{tpu_custom_call.1} parent=1 // pred_check
      _
    $region51: #{tpu_custom_call.1} parent=1 // pred_check_branch
      %120 = sbr.rel (0) target = $region53
    $region52: #{tpu_custom_call.1} parent=1 // pred_region
      %121 = dma.done [#allocation9], 16
    $region53: #{tpu_custom_call.1} parent=1 // pred_fallthru
      _
    // Predicated region
    $region54: #{tpu_custom_call.1} parent=1 // pred_check
      _
    $region55: #{tpu_custom_call.1} parent=1 // pred_check_branch
      %123 = sbr.rel (0) target = $region57
    $region56: #{tpu_custom_call.1} parent=1 // pred_region
      %124 = dma.done [#allocation12], 512
    $region57: #{tpu_custom_call.1} parent=1 // pred_fallthru
      _
    // Predicated region
    $region58: #{tpu_custom_call.1} parent=1 // pred_check
      _
    $region59: #{tpu_custom_call.1} parent=1 // pred_check_branch
      %126 = sbr.rel (0) target = $region61
    $region60: #{tpu_custom_call.1} parent=1 // pred_region
      %127 = dma.done [#allocation12], 512
    $region61: #{tpu_custom_call.1} parent=1 // pred_fallthru
      _
    // Predicated region
    $region62: #{tpu_custom_call.1} parent=1 // pred_check
      _
    $region63: #{tpu_custom_call.1} parent=1 // pred_check_branch
      %129 = sbr.rel (0) target = $region65
    $region64: #{tpu_custom_call.1} parent=1 // pred_region
      %130 = dma.done [#allocation15], 16
    $region65: #{tpu_custom_call.1} parent=1 // pred_fallthru
      _
    %v131 = vld [vmem:[#allocation2] sm:$0xff]
    %v132 = vld [vmem:[#allocation2 + $0x8] sm:$0xff]
    %v133 = vld [vmem:[#allocation5] sm:$0xff]
    %v134 = vld [vmem:[#allocation5 + $0x8] sm:$0xff]
    %v135 = vld [vmem:[#allocation5 + $0x10] sm:$0xff]
    %v136 = vld [vmem:[#allocation5 + $0x18] sm:$0xff]
    %v137 = vld [vmem:[#allocation7] sm:$0x1]
    %v139 = vlaneseq
    %v140 = vshrl.u32 %v139, 7
    %v141 = vsub.s32 0, %v140
    %v142 = vrot.slane %v137, %v141
    %vm144 = vcmask 261120
    %v146 = vsel %vm144, %v131, 0
    %v149 = vsel %vm144, %v132, 0
    %151 = vmatprep.subr.mxu0 0.0
    %152 = vmatpush1.msra.mxu0 %v133
    %153 = vmatprep.subr.mxu0 0.0
    %154 = vmatpush1.msra.mxu0 %v134
    %155 = vmatprep.subr.mxu0 0.0
    %156 = vmatpush1.msra.mxu0 %v135
    %157 = vmatprep.subr.mxu0 0.0
    %158 = vmatpush1.msra.mxu0 %v136
    %159 = vmatprep.subr.mxu0 0.0
    %160 = vmatpush1.msra.mxu0 0.0
    %161 = vmatprep.subr.mxu0 0.0
    %162 = vmatpush1.msra.mxu0 0.0
    %163 = vmatprep.subr.mxu0 0.0
    %164 = vmatpush1.msra.mxu0 0.0
    %165 = vmatprep.subr.mxu0 0.0
    %166 = vmatpush1.msra.mxu0 0.0
    %167 = vmatprep.subr.mxu0 0.0
    %168 = vmatpush1.msra.mxu0 0.0
    %169 = vmatprep.subr.mxu0 0.0
    %170 = vmatpush1.msra.mxu0 0.0
    %171 = vmatprep.subr.mxu0 0.0
    %172 = vmatpush1.msra.mxu0 0.0
    %173 = vmatprep.subr.mxu0 0.0
    %174 = vmatpush1.msra.mxu0 0.0
    %175 = vmatprep.subr.mxu0 0.0
    %176 = vmatpush1.msra.mxu0 0.0
    %177 = vmatprep.subr.mxu0 0.0
    %178 = vmatpush1.msra.mxu0 0.0
    %179 = vmatprep.subr.mxu0 0.0
    %180 = vmatpush1.msra.mxu0 0.0
    %181 = vmatprep.subr.mxu0 0.0
    %182 = vmatpush1.msra.mxu0 0.0
    %183 = vmatprep.subr.mxu0 0.0
    %184 = vmatpush1.msra.mxu0 0.0
    %185 = vmatprep.subr.mxu0 0.0
    %186 = vmatpush1.msra.mxu0 0.0
    %187 = vmatprep.subr.mxu0 0.0
    %188 = vmatpush1.msra.mxu0 0.0
    %189 = vmatprep.subr.mxu0 0.0
    %190 = vmatpush1.msra.mxu0 0.0
    %191 = vmatprep.subr.mxu0 0.0
    %192 = vmatpush1.msra.mxu0 0.0
    %193 = vmatprep.subr.mxu0 0.0
    %194 = vmatpush1.msra.mxu0 0.0
    %195 = vmatprep.subr.mxu0 0.0
    %196 = vmatpush1.msra.mxu0 0.0
    %197 = vmatprep.subr.mxu0 0.0
    %198 = vmatpush1.msra.mxu0 0.0
    %199 = vmatprep.subr.mxu0 0.0
    %200 = vmatpush1.msra.mxu0 0.0
    %201 = vmatprep.subr.mxu0 0.0
    %202 = vmatpush1.msra.mxu0 0.0
    %203 = vmatprep.subr.mxu0 0.0
    %204 = vmatpush1.msra.mxu0 0.0
    %205 = vmatprep.subr.mxu0 0.0
    %206 = vmatpush1.msra.mxu0 0.0
    %207 = vmatprep.subr.mxu0 0.0
    %208 = vmatpush1.msra.mxu0 0.0
    %209 = vmatprep.subr.mxu0 0.0
    %210 = vmatpush1.msra.mxu0 0.0
    %211 = vmatprep.subr.mxu0 0.0
    %212 = vmatpush1.msra.mxu0 0.0
    %213 = vmatprep.subr.mxu0 0.0
    %214 = vmatpush1.msra.mxu0 0.0
    %215 = vmatprep.mubr.f32.mxu0 0.0
    %216 = vmatmul.mubr.f32.gmra.mrb[0].mxu0 %v146
    %v217 = vpop.f32.mrb[0].mxu0
    %v218 = vadd.f32 %v142, %v217
    %v219 = vpop.f32.mrb[0].mxu0
    %220 = vmatprep.mubr.f32.mxu0 0.0
    %221 = vmatmul.mubr.f32.gmra.mrb[0].mxu0 %v149
    %v222 = vpop.f32.mrb[0].mxu0
    %v223 = vadd.f32 %v142, %v222
    %v224 = vpop.f32.mrb[0].mxu0
    %225 = vdwg.mxu0
    %v226 = vsel %vm144, %v218, 0.0
    %227 = vadd.xlane.f32.xlu0 %v226
    %v228 = vpop.xlane.xlu0 %227
    %v229 = vsel %vm144, %v223, 0.0
    %230 = vadd.xlane.f32.xlu0 %v229
    %v231 = vpop.xlane.xlu0 %230
    %v232 = vrcp.pop 32.0
    %v233 = vmul.f32 %v228, %v232
    %v234 = vmul.f32 %v231, %v232
    %v235 = vsub.f32 %v218, %v233
    %v236 = vsub.f32 %v223, %v234
    %v237 = vmul.f32 %v235, %v235
    %v238 = vmul.f32 %v236, %v236
    %v239 = vsel %vm144, %v237, 0.0
    %240 = vadd.xlane.f32.xlu0 %v239
    %v241 = vpop.xlane.xlu0 %240
    %v242 = vsel %vm144, %v238, 0.0
    %243 = vadd.xlane.f32.xlu0 %v242
    %v244 = vpop.xlane.xlu0 %243
    %v245 = vmul.f32 %v241, %v232
    %v246 = vmul.f32 %v244, %v232
    %v247 = vadd.f32 %v245, 1e-05
    %v248 = vadd.f32 %v246, 1e-05
    %v249 = vrsqrt.pop %v247
    %v250 = vrsqrt.pop %v248
    %v251 = vmul.f32 %v235, %v249
    %v252 = vmul.f32 %v236, %v250
    %v253 = vld [vmem:[#allocation8] sm:$0x1]
    %v255 = vlaneseq
    %v256 = vshrl.u32 %v255, 7
    %v257 = vsub.s32 0, %v256
    %v258 = vrot.slane %v253, %v257
    %v260 = vmul.f32 %v251, %v258
    %v261 = vmul.f32 %v252, %v258
    %v262 = vld [vmem:[#allocation10] sm:$0x1]
    %v264 = vlaneseq
    %v265 = vshrl.u32 %v264, 7
    %v266 = vsub.s32 0, %v265
    %v267 = vrot.slane %v262, %v266
    %v269 = vadd.f32 %v260, %v267
    %v270 = vadd.f32 %v261, %v267
    %v271 = vmax.f32 %v269, 0.0
    %v272 = vmax.f32 %v270, 0.0
    %v273 = vsel %vm144, %v271, -inf
    %v274 = vrot.slane %v273, 4
    %v275 = vmax.f32 %v273, %v274
    %v276 = vrot.slane %v275, 2
    %v277 = vmax.f32 %v275, %v276
    %v278 = vrot.slane %v277, 1
    %v279 = vmax.f32 %v277, %v278
    %v280 = vsel %vm144, %v272, -inf
    %v281 = vrot.slane %v280, 4
    %v282 = vmax.f32 %v280, %v281
    %v283 = vrot.slane %v282, 2
    %v284 = vmax.f32 %v282, %v283
    %v285 = vrot.slane %v284, 1
    %v286 = vmax.f32 %v284, %v285
    %v287 = vld [vmem:[#allocation11] sm:$0xff]
    %v288 = vld [vmem:[#allocation11 + $0x8] sm:$0xff]
    %v289 = vld [vmem:[#allocation11 + $0x10] sm:$0xff]
    %v290 = vld [vmem:[#allocation11 + $0x18] sm:$0xff]
    %v292 = vsel %vm144, %v271, 0
    %v295 = vsel %vm144, %v272, 0
    %297 = vmatprep.subr.mxu0 0.0
    %298 = vmatpush1.msra.mxu0 %v287
    %299 = vmatprep.subr.mxu0 0.0
    %300 = vmatpush1.msra.mxu0 %v288
    %301 = vmatprep.subr.mxu0 0.0
    %302 = vmatpush1.msra.mxu0 %v289
    %303 = vmatprep.subr.mxu0 0.0
    %304 = vmatpush1.msra.mxu0 %v290
    %305 = vmatprep.subr.mxu0 0.0
    %306 = vmatpush1.msra.mxu0 0.0
    %307 = vmatprep.subr.mxu0 0.0
    %308 = vmatpush1.msra.mxu0 0.0
    %309 = vmatprep.subr.mxu0 0.0
    %310 = vmatpush1.msra.mxu0 0.0
    %311 = vmatprep.subr.mxu0 0.0
    %312 = vmatpush1.msra.mxu0 0.0
    %313 = vmatprep.subr.mxu0 0.0
    %314 = vmatpush1.msra.mxu0 0.0
    %315 = vmatprep.subr.mxu0 0.0
    %316 = vmatpush1.msra.mxu0 0.0
    %317 = vmatprep.subr.mxu0 0.0
    %318 = vmatpush1.msra.mxu0 0.0
    %319 = vmatprep.subr.mxu0 0.0
    %320 = vmatpush1.msra.mxu0 0.0
    %321 = vmatprep.subr.mxu0 0.0
    %322 = vmatpush1.msra.mxu0 0.0
    %323 = vmatprep.subr.mxu0 0.0
    %324 = vmatpush1.msra.mxu0 0.0
    %325 = vmatprep.subr.mxu0 0.0
    %326 = vmatpush1.msra.mxu0 0.0
    %327 = vmatprep.subr.mxu0 0.0
    %328 = vmatpush1.msra.mxu0 0.0
    %329 = vmatprep.subr.mxu0 0.0
    %330 = vmatpush1.msra.mxu0 0.0
    %331 = vmatprep.subr.mxu0 0.0
    %332 = vmatpush1.msra.mxu0 0.0
    %333 = vmatprep.subr.mxu0 0.0
    %334 = vmatpush1.msra.mxu0 0.0
    %335 = vmatprep.subr.mxu0 0.0
    %336 = vmatpush1.msra.mxu0 0.0
    %337 = vmatprep.subr.mxu0 0.0
    %338 = vmatpush1.msra.mxu0 0.0
    %339 = vmatprep.subr.mxu0 0.0
    %340 = vmatpush1.msra.mxu0 0.0
    %341 = vmatprep.subr.mxu0 0.0
    %342 = vmatpush1.msra.mxu0 0.0
    %343 = vmatprep.subr.mxu0 0.0
    %344 = vmatpush1.msra.mxu0 0.0
    %345 = vmatprep.subr.mxu0 0.0
    %346 = vmatpush1.msra.mxu0 0.0
    %347 = vmatprep.subr.mxu0 0.0
    %348 = vmatpush1.msra.mxu0 0.0
    %349 = vmatprep.subr.mxu0 0.0
    %350 = vmatpush1.msra.mxu0 0.0
    %351 = vmatprep.subr.mxu0 0.0
    %352 = vmatpush1.msra.mxu0 0.0
    %353 = vmatprep.subr.mxu0 0.0
    %354 = vmatpush1.msra.mxu0 0.0
    %355 = vmatprep.subr.mxu0 0.0
    %356 = vmatpush1.msra.mxu0 0.0
    %357 = vmatprep.subr.mxu0 0.0
    %358 = vmatpush1.msra.mxu0 0.0
    %359 = vmatprep.subr.mxu0 0.0
    %360 = vmatpush1.msra.mxu0 0.0
    %361 = vmatprep.mubr.f32.mxu0 0.0
    %362 = vmatmul.mubr.f32.gmra.mrb[0].mxu0 %v292
    %v363 = vpop.f32.mrb[0].mxu0
    %v364 = vadd.f32 0.0, %v363
    %v365 = vpop.f32.mrb[0].mxu0
    %366 = vmatprep.mubr.f32.mxu0 0.0
    %367 = vmatmul.mubr.f32.gmra.mrb[0].mxu0 %v295
    %v368 = vpop.f32.mrb[0].mxu0
    %v369 = vadd.f32 0.0, %v368
    %v370 = vpop.f32.mrb[0].mxu0
    %371 = vdwg.mxu0
    %v372 = vld [vmem:[#allocation13] sm:$0xff]
    %v373 = vld [vmem:[#allocation13 + $0x8] sm:$0xff]
    %v374 = vld [vmem:[#allocation13 + $0x10] sm:$0xff]
    %v375 = vld [vmem:[#allocation13 + $0x18] sm:$0xff]
    %v376 = vld [vmem:[#allocation14] sm:$0x1]
    %v378 = vlaneseq
    %v379 = vshrl.u32 %v378, 7
    %v380 = vsub.s32 0, %v379
    %v381 = vrot.slane %v376, %v380
    %vm385 = vcmask 1041409
    %v386 = vsel %vm385, %v286, %v279
    %v387 = vsel %vm144, %v386, 0
    %389 = vmatprep.subr.mxu0 0.0
    %390 = vmatpush1.msra.mxu0 %v372
    %391 = vmatprep.subr.mxu0 0.0
    %392 = vmatpush1.msra.mxu0 %v373
    %393 = vmatprep.subr.mxu0 0.0
    %394 = vmatpush1.msra.mxu0 %v374
    %395 = vmatprep.subr.mxu0 0.0
    %396 = vmatpush1.msra.mxu0 %v375
    %397 = vmatprep.subr.mxu0 0.0
    %398 = vmatpush1.msra.mxu0 0.0
    %399 = vmatprep.subr.mxu0 0.0
    %400 = vmatpush1.msra.mxu0 0.0
    %401 = vmatprep.subr.mxu0 0.0
    %402 = vmatpush1.msra.mxu0 0.0
    %403 = vmatprep.subr.mxu0 0.0
    %404 = vmatpush1.msra.mxu0 0.0
    %405 = vmatprep.subr.mxu0 0.0
    %406 = vmatpush1.msra.mxu0 0.0
    %407 = vmatprep.subr.mxu0 0.0
    %408 = vmatpush1.msra.mxu0 0.0
    %409 = vmatprep.subr.mxu0 0.0
    %410 = vmatpush1.msra.mxu0 0.0
    %411 = vmatprep.subr.mxu0 0.0
    %412 = vmatpush1.msra.mxu0 0.0
    %413 = vmatprep.subr.mxu0 0.0
    %414 = vmatpush1.msra.mxu0 0.0
    %415 = vmatprep.subr.mxu0 0.0
    %416 = vmatpush1.msra.mxu0 0.0
    %417 = vmatprep.subr.mxu0 0.0
    %418 = vmatpush1.msra.mxu0 0.0
    %419 = vmatprep.subr.mxu0 0.0
    %420 = vmatpush1.msra.mxu0 0.0
    %421 = vmatprep.subr.mxu0 0.0
    %422 = vmatpush1.msra.mxu0 0.0
    %423 = vmatprep.subr.mxu0 0.0
    %424 = vmatpush1.msra.mxu0 0.0
    %425 = vmatprep.subr.mxu0 0.0
    %426 = vmatpush1.msra.mxu0 0.0
    %427 = vmatprep.subr.mxu0 0.0
    %428 = vmatpush1.msra.mxu0 0.0
    %429 = vmatprep.subr.mxu0 0.0
    %430 = vmatpush1.msra.mxu0 0.0
    %431 = vmatprep.subr.mxu0 0.0
    %432 = vmatpush1.msra.mxu0 0.0
    %433 = vmatprep.subr.mxu0 0.0
    %434 = vmatpush1.msra.mxu0 0.0
    %435 = vmatprep.subr.mxu0 0.0
    %436 = vmatpush1.msra.mxu0 0.0
    %437 = vmatprep.subr.mxu0 0.0
    %438 = vmatpush1.msra.mxu0 0.0
    %439 = vmatprep.subr.mxu0 0.0
    %440 = vmatpush1.msra.mxu0 0.0
    %441 = vmatprep.subr.mxu0 0.0
    %442 = vmatpush1.msra.mxu0 0.0
    %443 = vmatprep.subr.mxu0 0.0
    %444 = vmatpush1.msra.mxu0 0.0
    %445 = vmatprep.subr.mxu0 0.0
    %446 = vmatpush1.msra.mxu0 0.0
    %447 = vmatprep.subr.mxu0 0.0
    %448 = vmatpush1.msra.mxu0 0.0
    %449 = vmatprep.subr.mxu0 0.0
    %450 = vmatpush1.msra.mxu0 0.0
    %451 = vmatprep.subr.mxu0 0.0
    %452 = vmatpush1.msra.mxu0 0.0
    %453 = vmatprep.mubr.f32.mxu0 0.0
    %454 = vmatmul.mubr.f32.gmra.mrb[0].mxu0 %v387
    %v455 = vpop.f32.mrb[0].mxu0
    %v456 = vadd.f32 %v381, %v455
    %v457 = vpop.f32.mrb[0].mxu0
    %458 = vdwg.mxu0
    %v461 = vunpack.c.l.s4 1966171168
    %v462 = vunpack.c.0.s8 %v461
    %v463 = vlaneseq
    %v464 = vshrl.u32 %v463, 7
    %v465 = vsub.s32 %v462, %v464
    %v466 = vrot.slane %v456, %v465
    %v467 = vcombine.high %v466, %v466
    %v469 = vunpack.c.l.s4 1966171168
    %v470 = vunpack.c.0.s8 %v469
    %v471 = vlaneseq
    %v472 = vshrl.u32 %v471, 7
    %v473 = vsub.s32 %v470, %v472
    %v474 = vrot.slane %v466, %v473
    %v476 = vunpack.c.l.s4 1966171168
    %v477 = vunpack.c.0.s8 %v476
    %v478 = vlaneseq
    %v479 = vshrl.u32 %v478, 7
    %v480 = vsub.s32 %v477, %v479
    %v481 = vrot.slane %v467, %v480
    %v482 = vlaneseq
    %v483 = vshrl.u32 %v482, 7
    %v484 = vsub.s32 0, %v483
    %v485 = vrot.slane %v474, %v484
    %v486 = vlaneseq
    %v487 = vshrl.u32 %v486, 7
    %v488 = vsub.s32 0, %v487
    %v489 = vrot.slane %v481, %v488
    %v492 = vadd.f32 %v364, %v485
    %v493 = vadd.f32 %v369, %v489
    %vm494 = vcmask 523264
    %495 = vst.msk [vmem:[#allocation16] sm:$0xff] %vm494, %v492
    %496 = vst.msk [vmem:[#allocation16 + $0x8] sm:$0xff] %vm494, %v493
    // Predicated region
    $region66: #{tpu_custom_call.1} parent=1 // pred_check
      _
    $region67: #{tpu_custom_call.1} parent=1 // pred_check_branch
      %498 = sbr.rel (0) target = $region69
    $region68: #{tpu_custom_call.1} parent=1 // pred_region
      %s500 = ssub.s32 256, 256
      %501 = vsyncadd [#allocation4], %s500
      %s502 = sshll.u32 [#allocation16], 4
      %s503 = int_to_ptr.vmem [resolvable:$true] %s502
      %508 = dma.vmem_to_hbm [thread:$0]  %s503, 256, %s8, [#allocation4], 128, 128, 8
    $region69: #{tpu_custom_call.1} parent=1 // pred_fallthru
      _
    // Predicated region
    $region70: #{tpu_custom_call.1} parent=1 // pred_check
      _
    $region71: #{tpu_custom_call.1} parent=1 // pred_check_branch
      %510 = sbr.rel (0) target = $region73
    $region72: #{tpu_custom_call.1} parent=1 // pred_region
      %511 = dma.done [#allocation4], 256
    $region73: #{tpu_custom_call.1} parent=1 // pred_fallthru
      _
    %512 = vsyncpa [#allocation3], 1
    %513 = vsyncpa [#allocation6], 1
    %514 = vsyncpa [#allocation9], 1
    %515 = vsyncpa [#allocation12], 1
    %516 = vsyncpa [#allocation15], 1
    %517 = vsyncpa [#allocation4], 1

</llo_original>
